<compile_context>
chip_gen: v5e
topology: v5e:2x2
jax: 0.10.0
libtpu: 0.0.40
codegen_flags: <defaults>
</compile_context>

<pallas_src>
import functools

import jax
import jax.numpy as jnp
from jax.experimental import pallas as pl
from jax.experimental.pallas import tpu as pltpu


def _mha_map_kernel(q_ref, k_ref, wq_ref, bq_ref, wk_ref, bk_ref,
                    out_ref, kpT_ref, logits_ref, *,
                    num_heads, head_dim, hw_valid, hw_pad, approx_recip):
    # q_ref:      (tq, D)          query tile for the current (batch, q-tile)
    # k_ref:      (D, HW_pad)      feature map, native NCHW-flattened, HW zero-padded
    # wq_ref:     (nh, D, c)       per-head q-projection weights (norm folded in)
    # bq_ref:     (nh, 1, c)       per-head q bias (norm folded in), f32
    # wk_ref:     (hidden, D)      k-projection weight, PyTorch layout
    # bk_ref:     (hidden, 1)      k bias as a column, f32
    # out_ref:    (tq, nh*HW_pad)  softmaxed attention map (head-major), bf16/f32
    # kpT_ref:    (hidden, HW_pad) persistent VMEM scratch, compute dtype
    # logits_ref: (tq, nh*HW_pad)  f32 VMEM scratch slab (per Q tile, small)
    qi = pl.program_id(1)

    # K projection in transposed layout, computed once per batch element (Q axis is
    # "arbitrary"/sequential, so qi == 0 runs before the other Q tiles of this b).
    @pl.when(qi == 0)
    def _():
        kpT_ref[...] = (jnp.dot(wk_ref[...], k_ref[...],
                                preferred_element_type=jnp.float32)
                        + bk_ref[...]).astype(kpT_ref.dtype)

    if hw_pad != hw_valid:
        col = jax.lax.broadcasted_iota(jnp.int32, (1, hw_pad), 1)
        valid = col < hw_valid   # padded HW columns must not leak into the softmax

    for n in range(num_heads):
        # Per-head Q projection (normalize_fact folded into wq/bq); cast to the
        # compute dtype so the big logits dot runs with bf16 MXU operands.
        qh = (jnp.dot(q_ref[...], wq_ref[n], preferred_element_type=jnp.float32)
              + bq_ref[n]).astype(kpT_ref.dtype)                       # (tq, c)
        khT = kpT_ref[n * head_dim:(n + 1) * head_dim, :]              # (c, HW_pad)
        # (tq, c) x (c, HW_pad): lane-dense (128-aligned) slab slice, f32 accumulate.
        logits = jnp.dot(qh, khT, preferred_element_type=jnp.float32)
        if hw_pad != hw_valid:
            logits = jnp.where(valid, logits, -jnp.inf)
        logits_ref[:, n * hw_pad:(n + 1) * hw_pad] = logits

    # Joint softmax over heads AND spatial positions (matches softmax(flatten(2), -1)).
    logits = logits_ref[...]
    m = jnp.max(logits, axis=-1, keepdims=True)
    e = jnp.exp(logits - m)
    s = jnp.sum(e, axis=-1, keepdims=True)
    inv = pl.reciprocal(s, approx=approx_recip)   # approx=True -> EUP vrcp (fast path)
    out_ref[...] = (e * inv).astype(out_ref.dtype)


def mh_attention_map(q, k, wq, bq, wk, bk, num_heads, *,
                     compute_dtype=jnp.bfloat16, out_dtype=None,
                     q_tile=32, vmem_limit_bytes=None):
    """q: [B, Q, D]; k: [B, D, H, W] (NCHW). Returns [B, Q, num_heads, H, W]."""
    B, Q, D = q.shape
    _, Dk, H, W = k.shape
    assert Dk == D
    hidden = wq.shape[0]
    assert hidden % num_heads == 0
    head_dim = hidden // num_heads
    normalize_fact = float(hidden / num_heads) ** (-0.5)
    HW = H * W

    exact = (compute_dtype == jnp.float32)
    if out_dtype is None:
        out_dtype = jnp.float32 if exact else jnp.bfloat16

    # --- padding for lane/sublane alignment -------------------------------------
    hw_pad = ((HW + 127) // 128) * 128           # lane-dense per-head slices
    tq = max(8, ((min(q_tile, Q) + 7) // 8) * 8) # sublane-aligned Q tile
    q_pad_len = ((Q + tq - 1) // tq) * tq
    n_q_tiles = q_pad_len // tq

    # k stays in native (B, D, HW) layout; zero-pad HW (padded cols masked to -inf
    # in-kernel). No wrapper-side HBM transpose pass.
    k_flat = k.reshape(B, D, HW)
    if hw_pad != HW:
        k_flat = jnp.pad(k_flat, ((0, 0), (0, 0), (0, hw_pad - HW)))
    if q_pad_len != Q:
        q = jnp.pad(q, ((0, 0), (0, q_pad_len - Q), (0, 0)))

    # Pre-split q weights per head and fold normalize_fact into weight + bias:
    # (W q + b) * norm == q @ (norm * W^T)_head + norm * b_head.
    wq_h = jnp.transpose(wq.reshape(num_heads, head_dim, D) * normalize_fact,
                         (0, 2, 1))                                    # (nh, D, c)
    bq_h = bq.reshape(num_heads, 1, head_dim) * normalize_fact         # (nh, 1, c)
    bk_col = bk.reshape(hidden, 1)                                     # (hidden, 1)

    # bf16 (or f32) operands; all matmuls accumulate in f32, biases stay f32.
    q_c = q.astype(compute_dtype)
    k_c = k_flat.astype(compute_dtype)
    wq_c = wq_h.astype(compute_dtype)
    wk_c = wk.astype(compute_dtype)
    bq_f = bq_h.astype(jnp.float32)
    bk_f = bk_col.astype(jnp.float32)

    kernel = functools.partial(
        _mha_map_kernel, num_heads=num_heads, head_dim=head_dim,
        hw_valid=HW, hw_pad=hw_pad, approx_recip=not exact)

    out = pl.pallas_call(
        kernel,
        out_shape=jax.ShapeDtypeStruct((B, q_pad_len, num_heads * hw_pad), out_dtype),
        grid_spec=pltpu.PrefetchScalarGridSpec(
            num_scalar_prefetch=0,
            grid=(B, n_q_tiles),
            in_specs=[
                # Leading batch dim squeezed (None) -> kernel refs are 2-D.
                pl.BlockSpec((None, tq, D), lambda b, qi: (b, qi, 0)),
                # k block index is constant in qi -> DMA'd once per batch element.
                pl.BlockSpec((None, D, hw_pad), lambda b, qi: (b, 0, 0)),
                pl.BlockSpec((num_heads, D, head_dim), lambda b, qi: (0, 0, 0)),
                pl.BlockSpec((num_heads, 1, head_dim), lambda b, qi: (0, 0, 0)),
                pl.BlockSpec((hidden, D), lambda b, qi: (0, 0)),
                pl.BlockSpec((hidden, 1), lambda b, qi: (0, 0)),
            ],
            out_specs=pl.BlockSpec((None, tq, num_heads * hw_pad),
                                   lambda b, qi: (b, qi, 0)),
            scratch_shapes=[
                pltpu.VMEM((hidden, hw_pad), compute_dtype),           # kpT cache
                pltpu.VMEM((tq, num_heads * hw_pad), jnp.float32),     # logits slab
            ],
        ),
        compiler_params=pltpu.CompilerParams(
            dimension_semantics=("parallel", "arbitrary"),
            vmem_limit_bytes=vmem_limit_bytes),
    )(q_c, k_c, wq_c, bq_f, wk_c, bk_f)

    # Strip Q / HW padding and restore (B, Q, nh, H, W).
    out = out[:, :Q, :].reshape(B, Q, num_heads, hw_pad)[..., :HW]
    return out.reshape(B, Q, num_heads, H, W)


def _reference(q, k, wq, bq, wk, bk, num_heads):
    """Pure-JAX replica of the PyTorch forward (mask=None, no dropout)."""
    B, Q, D = q.shape
    hidden = wq.shape[0]
    c = hidden // num_heads
    H, W = k.shape[-2], k.shape[-1]
    norm = float(hidden / num_heads) ** (-0.5)
    qp = q @ wq.T + bq                                                  # [B,Q,hidden]
    kp = jnp.einsum('bdhw,ed->behw', k, wk) + bk[None, :, None, None]   # [B,hidden,H,W]
    qh = qp.reshape(B, Q, num_heads, c)
    kh = kp.reshape(B, num_heads, c, H, W)
    weights = jnp.einsum('bqnc,bnchw->bqnhw', qh * norm, kh)
    flat = weights.reshape(B, Q, -1)
    flat = jax.nn.softmax(flat, axis=-1)
    return flat.reshape(B, Q, num_heads, H, W)


if __name__ == "__main__":
    # Module config (small, consistent with MHAttentionMap.__init__):
    query_dim = 32
    hidden_dim = 32
    num_heads = 4
    B, Q, H, W = 2, 8, 16, 16

    key = jax.random.PRNGKey(0)
    k_q, k_k, k_wq, k_wk = jax.random.split(key, 4)

    # Inputs: q [B, Q, query_dim], k NCHW [B, query_dim, H, W]
    q_in = jax.random.normal(k_q, (B, Q, query_dim), dtype=jnp.float32)
    k_in = jax.random.normal(k_k, (B, query_dim, H, W), dtype=jnp.float32)

    # Deterministic parameter init matching __init__:
    # xavier_uniform_ weights (shape [hidden_dim, query_dim]), zero biases.
    bound = (6.0 / (query_dim + hidden_dim)) ** 0.5
    wq = jax.random.uniform(k_wq, (hidden_dim, query_dim), jnp.float32, -bound, bound)
    wk = jax.random.uniform(k_wk, (hidden_dim, query_dim), jnp.float32, -bound, bound)
    bq = jnp.zeros((hidden_dim,), jnp.float32)
    bk = jnp.zeros((hidden_dim,), jnp.float32)

    ref = _reference(q_in, k_in, wq, bq, wk, bk, num_heads)

    # 1) Exact path (f32 operands, f32 output, exact reciprocal): tight check.
    out_f32 = mh_attention_map(q_in, k_in, wq, bq, wk, bk, num_heads,
                               compute_dtype=jnp.float32)
    out_f32 = jax.block_until_ready(out_f32)
    assert out_f32.shape == (B, Q, num_heads, H, W), out_f32.shape
    assert jnp.allclose(out_f32, ref, atol=1e-5, rtol=1e-5), \
        float(jnp.max(jnp.abs(out_f32 - ref)))

    # 2) Fast path (bf16 MXU operands + bf16 output + approx reciprocal): loose check.
    out_bf16 = mh_attention_map(q_in, k_in, wq, bq, wk, bk, num_heads)
    out_bf16 = jax.block_until_ready(out_bf16)
    assert out_bf16.shape == (B, Q, num_heads, H, W), out_bf16.shape
    assert out_bf16.dtype == jnp.bfloat16, out_bf16.dtype
    assert jnp.allclose(out_bf16.astype(jnp.float32), ref, atol=5e-3, rtol=5e-2), \
        float(jnp.max(jnp.abs(out_bf16.astype(jnp.float32) - ref)))

    # 3) Non-128-aligned HW and non-multiple-of-8 Q (exercises the lane-padding +
    #    -inf masking + Q-padding paths), checked tightly on the exact path.
    Q2, H2, W2 = 5, 10, 10
    q2 = jax.random.normal(jax.random.PRNGKey(1), (B, Q2, query_dim), jnp.float32)
    k2 = jax.random.normal(jax.random.PRNGKey(2), (B, query_dim, H2, W2), jnp.float32)
    ref2 = _reference(q2, k2, wq, bq, wk, bk, num_heads)
    out2 = mh_attention_map(q2, k2, wq, bq, wk, bk, num_heads,
                            compute_dtype=jnp.float32)
    out2 = jax.block_until_ready(out2)
    assert out2.shape == (B, Q2, num_heads, H2, W2), out2.shape
    assert jnp.allclose(out2, ref2, atol=1e-5, rtol=1e-5), \
        float(jnp.max(jnp.abs(out2 - ref2)))

    print("KERNEL_OK")
</pallas_src>

<mosaic_0001>
module attributes {stable_mosaic.version = 11 : i64} {
  func.func @_mha_map_kernel(%arg0: i32, %arg1: i32, %arg2: memref<1x8x32xf32, #tpu.memory_space<vmem>>, %arg3: memref<1x32x256xf32, #tpu.memory_space<vmem>>, %arg4: memref<4x32x8xf32, #tpu.memory_space<vmem>>, %arg5: memref<4x1x8xf32, #tpu.memory_space<vmem>>, %arg6: memref<32x32xf32, #tpu.memory_space<vmem>>, %arg7: memref<32x1xf32, #tpu.memory_space<vmem>>, %arg8: memref<1x8x1024xf32, #tpu.memory_space<vmem>>, %arg9: memref<32x256xf32, #tpu.memory_space<vmem>>, %arg10: memref<8x1024xf32, #tpu.memory_space<vmem>>) attributes {dimension_semantics = [#tpu.dimension_semantics<parallel>, #tpu.dimension_semantics<arbitrary>], iteration_bounds = array<i64: 2, 1>, scalar_prefetch = 0 : i64, scratch_operands = 2 : i64, tpu.core_type = #tpu.core_type<tc>, window_params = [{transform_indices = @transform_0, window_bounds = array<i64: 1, 8, 32>}, {transform_indices = @transform_1, window_bounds = array<i64: 1, 32, 256>}, {pipeline_mode = #tpu.pipeline_mode<synchronous>, transform_indices = @transform_2, window_bounds = array<i64: 4, 32, 8>}, {pipeline_mode = #tpu.pipeline_mode<synchronous>, transform_indices = @transform_3, window_bounds = array<i64: 4, 1, 8>}, {pipeline_mode = #tpu.pipeline_mode<synchronous>, transform_indices = @transform_4, window_bounds = array<i64: 32, 32>}, {pipeline_mode = #tpu.pipeline_mode<synchronous>, transform_indices = @transform_5, window_bounds = array<i64: 32, 1>}, {transform_indices = @transform_6, window_bounds = array<i64: 1, 8, 1024>}]} {
    %c0_i32 = arith.constant 0 : i32
    %0 = arith.cmpi eq, %arg1, %c0_i32 : i32
    %1 = arith.extui %0 : i1 to i32
    %c0_i32_0 = arith.constant 0 : i32
    %2 = arith.cmpi ne, %1, %c0_i32_0 : i32
    scf.if %2 {
      %c0_57 = arith.constant 0 : index
      %c0_58 = arith.constant 0 : index
      %65 = vector.load %arg6[%c0_57, %c0_58] : memref<32x32xf32, #tpu.memory_space<vmem>>, vector<32x32xf32>
      %c0_59 = arith.constant 0 : index
      %c0_60 = arith.constant 0 : index
      %c0_61 = arith.constant 0 : index
      %66 = vector.load %arg3[%c0_59, %c0_60, %c0_61] : memref<1x32x256xf32, #tpu.memory_space<vmem>>, vector<1x32x256xf32>
      %67 = vector.shape_cast %66 : vector<1x32x256xf32> to vector<32x256xf32>
      %cst_62 = arith.constant dense<0.000000e+00> : vector<32x256xf32>
      %68 = tpu.matmul %65, %67, %cst_62 {dimension_numbers = #tpu.dot_dimension_numbers<[1], [0], [0], [1], [0, 0, 1, 1], [], []>} : vector<32x32xf32>, vector<32x256xf32>, vector<32x256xf32> -> vector<32x256xf32>
      %c0_63 = arith.constant 0 : index
      %c0_64 = arith.constant 0 : index
      %69 = vector.load %arg7[%c0_63, %c0_64] : memref<32x1xf32, #tpu.memory_space<vmem>>, vector<32x1xf32>
      %70 = vector.broadcast %69 : vector<32x1xf32> to vector<32x256xf32>
      %71 = arith.addf %68, %70 : vector<32x256xf32>
      %c0_65 = arith.constant 0 : index
      %c0_66 = arith.constant 0 : index
      %72 = vector.load %arg9[%c0_65, %c0_66] : memref<32x256xf32, #tpu.memory_space<vmem>>, vector<32x256xf32>
      tpu.vector_store %arg9[%c0_65, %c0_66], %71 {strides = array<i32>} : memref<32x256xf32, #tpu.memory_space<vmem>>, vector<32x256xf32>,
    } else {
    }
    %c0 = arith.constant 0 : index
    %c0_1 = arith.constant 0 : index
    %c0_2 = arith.constant 0 : index
    %3 = vector.load %arg2[%c0, %c0_1, %c0_2] : memref<1x8x32xf32, #tpu.memory_space<vmem>>, vector<1x8x32xf32>
    %4 = vector.shape_cast %3 : vector<1x8x32xf32> to vector<8x32xf32>
    %c0_3 = arith.constant 0 : index
    %c0_4 = arith.constant 0 : index
    %c0_5 = arith.constant 0 : index
    %5 = vector.load %arg4[%c0_3, %c0_4, %c0_5] : memref<4x32x8xf32, #tpu.memory_space<vmem>>, vector<1x32x8xf32>
    %6 = vector.shape_cast %5 : vector<1x32x8xf32> to vector<32x8xf32>
    %cst = arith.constant dense<0.000000e+00> : vector<8x8xf32>
    %7 = tpu.matmul %4, %6, %cst {dimension_numbers = #tpu.dot_dimension_numbers<[1], [0], [0], [1], [0, 0, 1, 1], [], []>} : vector<8x32xf32>, vector<32x8xf32>, vector<8x8xf32> -> vector<8x8xf32>
    %c0_6 = arith.constant 0 : index
    %c0_7 = arith.constant 0 : index
    %c0_8 = arith.constant 0 : index
    %8 = vector.load %arg5[%c0_6, %c0_7, %c0_8] : memref<4x1x8xf32, #tpu.memory_space<vmem>>, vector<1x1x8xf32>
    %9 = vector.shape_cast %8 : vector<1x1x8xf32> to vector<1x8xf32>
    %10 = vector.broadcast %9 : vector<1x8xf32> to vector<8x8xf32>
    %11 = arith.addf %7, %10 : vector<8x8xf32>
    %c0_9 = arith.constant 0 : index
    %c0_10 = arith.constant 0 : index
    %12 = vector.load %arg9[%c0_9, %c0_10] : memref<32x256xf32, #tpu.memory_space<vmem>>, vector<8x256xf32>
    %cst_11 = arith.constant dense<0.000000e+00> : vector<8x256xf32>
    %13 = tpu.matmul %11, %12, %cst_11 {dimension_numbers = #tpu.dot_dimension_numbers<[1], [0], [0], [1], [0, 0, 1, 1], [], []>} : vector<8x8xf32>, vector<8x256xf32>, vector<8x256xf32> -> vector<8x256xf32>
    %c0_12 = arith.constant 0 : index
    %c0_13 = arith.constant 0 : index
    %14 = vector.load %arg10[%c0_12, %c0_13] : memref<8x1024xf32, #tpu.memory_space<vmem>>, vector<8x256xf32>
    tpu.vector_store %arg10[%c0_12, %c0_13], %13 {strides = array<i32>} : memref<8x1024xf32, #tpu.memory_space<vmem>>, vector<8x256xf32>,
    %c0_14 = arith.constant 0 : index
    %c0_15 = arith.constant 0 : index
    %c0_16 = arith.constant 0 : index
    %15 = vector.load %arg2[%c0_14, %c0_15, %c0_16] : memref<1x8x32xf32, #tpu.memory_space<vmem>>, vector<1x8x32xf32>
    %16 = vector.shape_cast %15 : vector<1x8x32xf32> to vector<8x32xf32>
    %c1 = arith.constant 1 : index
    %c0_17 = arith.constant 0 : index
    %c0_18 = arith.constant 0 : index
    %17 = vector.load %arg4[%c1, %c0_17, %c0_18] : memref<4x32x8xf32, #tpu.memory_space<vmem>>, vector<1x32x8xf32>
    %18 = vector.shape_cast %17 : vector<1x32x8xf32> to vector<32x8xf32>
    %cst_19 = arith.constant dense<0.000000e+00> : vector<8x8xf32>
    %19 = tpu.matmul %16, %18, %cst_19 {dimension_numbers = #tpu.dot_dimension_numbers<[1], [0], [0], [1], [0, 0, 1, 1], [], []>} : vector<8x32xf32>, vector<32x8xf32>, vector<8x8xf32> -> vector<8x8xf32>
    %c1_20 = arith.constant 1 : index
    %c0_21 = arith.constant 0 : index
    %c0_22 = arith.constant 0 : index
    %20 = vector.load %arg5[%c1_20, %c0_21, %c0_22] : memref<4x1x8xf32, #tpu.memory_space<vmem>>, vector<1x1x8xf32>
    %21 = vector.shape_cast %20 : vector<1x1x8xf32> to vector<1x8xf32>
    %22 = vector.broadcast %21 : vector<1x8xf32> to vector<8x8xf32>
    %23 = arith.addf %19, %22 : vector<8x8xf32>
    %c8 = arith.constant 8 : index
    %c0_23 = arith.constant 0 : index
    %24 = vector.load %arg9[%c8, %c0_23] : memref<32x256xf32, #tpu.memory_space<vmem>>, vector<8x256xf32>
    %cst_24 = arith.constant dense<0.000000e+00> : vector<8x256xf32>
    %25 = tpu.matmul %23, %24, %cst_24 {dimension_numbers = #tpu.dot_dimension_numbers<[1], [0], [0], [1], [0, 0, 1, 1], [], []>} : vector<8x8xf32>, vector<8x256xf32>, vector<8x256xf32> -> vector<8x256xf32>
    %c0_25 = arith.constant 0 : index
    %c256 = arith.constant 256 : index
    %26 = vector.load %arg10[%c0_25, %c256] : memref<8x1024xf32, #tpu.memory_space<vmem>>, vector<8x256xf32>
    tpu.vector_store %arg10[%c0_25, %c256], %25 {strides = array<i32>} : memref<8x1024xf32, #tpu.memory_space<vmem>>, vector<8x256xf32>,
    %c0_26 = arith.constant 0 : index
    %c0_27 = arith.constant 0 : index
    %c0_28 = arith.constant 0 : index
    %27 = vector.load %arg2[%c0_26, %c0_27, %c0_28] : memref<1x8x32xf32, #tpu.memory_space<vmem>>, vector<1x8x32xf32>
    %28 = vector.shape_cast %27 : vector<1x8x32xf32> to vector<8x32xf32>
    %c2 = arith.constant 2 : index
    %c0_29 = arith.constant 0 : index
    %c0_30 = arith.constant 0 : index
    %29 = vector.load %arg4[%c2, %c0_29, %c0_30] : memref<4x32x8xf32, #tpu.memory_space<vmem>>, vector<1x32x8xf32>
    %30 = vector.shape_cast %29 : vector<1x32x8xf32> to vector<32x8xf32>
    %cst_31 = arith.constant dense<0.000000e+00> : vector<8x8xf32>
    %31 = tpu.matmul %28, %30, %cst_31 {dimension_numbers = #tpu.dot_dimension_numbers<[1], [0], [0], [1], [0, 0, 1, 1], [], []>} : vector<8x32xf32>, vector<32x8xf32>, vector<8x8xf32> -> vector<8x8xf32>
    %c2_32 = arith.constant 2 : index
    %c0_33 = arith.constant 0 : index
    %c0_34 = arith.constant 0 : index
    %32 = vector.load %arg5[%c2_32, %c0_33, %c0_34] : memref<4x1x8xf32, #tpu.memory_space<vmem>>, vector<1x1x8xf32>
    %33 = vector.shape_cast %32 : vector<1x1x8xf32> to vector<1x8xf32>
    %34 = vector.broadcast %33 : vector<1x8xf32> to vector<8x8xf32>
    %35 = arith.addf %31, %34 : vector<8x8xf32>
    %c16 = arith.constant 16 : index
    %c0_35 = arith.constant 0 : index
    %36 = vector.load %arg9[%c16, %c0_35] : memref<32x256xf32, #tpu.memory_space<vmem>>, vector<8x256xf32>
    %cst_36 = arith.constant dense<0.000000e+00> : vector<8x256xf32>
    %37 = tpu.matmul %35, %36, %cst_36 {dimension_numbers = #tpu.dot_dimension_numbers<[1], [0], [0], [1], [0, 0, 1, 1], [], []>} : vector<8x8xf32>, vector<8x256xf32>, vector<8x256xf32> -> vector<8x256xf32>
    %c0_37 = arith.constant 0 : index
    %c512 = arith.constant 512 : index
    %38 = vector.load %arg10[%c0_37, %c512] : memref<8x1024xf32, #tpu.memory_space<vmem>>, vector<8x256xf32>
    tpu.vector_store %arg10[%c0_37, %c512], %37 {strides = array<i32>} : memref<8x1024xf32, #tpu.memory_space<vmem>>, vector<8x256xf32>,
    %c0_38 = arith.constant 0 : index
    %c0_39 = arith.constant 0 : index
    %c0_40 = arith.constant 0 : index
    %39 = vector.load %arg2[%c0_38, %c0_39, %c0_40] : memref<1x8x32xf32, #tpu.memory_space<vmem>>, vector<1x8x32xf32>
    %40 = vector.shape_cast %39 : vector<1x8x32xf32> to vector<8x32xf32>
    %c3 = arith.constant 3 : index
    %c0_41 = arith.constant 0 : index
    %c0_42 = arith.constant 0 : index
    %41 = vector.load %arg4[%c3, %c0_41, %c0_42] : memref<4x32x8xf32, #tpu.memory_space<vmem>>, vector<1x32x8xf32>
    %42 = vector.shape_cast %41 : vector<1x32x8xf32> to vector<32x8xf32>
    %cst_43 = arith.constant dense<0.000000e+00> : vector<8x8xf32>
    %43 = tpu.matmul %40, %42, %cst_43 {dimension_numbers = #tpu.dot_dimension_numbers<[1], [0], [0], [1], [0, 0, 1, 1], [], []>} : vector<8x32xf32>, vector<32x8xf32>, vector<8x8xf32> -> vector<8x8xf32>
    %c3_44 = arith.constant 3 : index
    %c0_45 = arith.constant 0 : index
    %c0_46 = arith.constant 0 : index
    %44 = vector.load %arg5[%c3_44, %c0_45, %c0_46] : memref<4x1x8xf32, #tpu.memory_space<vmem>>, vector<1x1x8xf32>
    %45 = vector.shape_cast %44 : vector<1x1x8xf32> to vector<1x8xf32>
    %46 = vector.broadcast %45 : vector<1x8xf32> to vector<8x8xf32>
    %47 = arith.addf %43, %46 : vector<8x8xf32>
    %c24 = arith.constant 24 : index
    %c0_47 = arith.constant 0 : index
    %48 = vector.load %arg9[%c24, %c0_47] : memref<32x256xf32, #tpu.memory_space<vmem>>, vector<8x256xf32>
    %cst_48 = arith.constant dense<0.000000e+00> : vector<8x256xf32>
    %49 = tpu.matmul %47, %48, %cst_48 {dimension_numbers = #tpu.dot_dimension_numbers<[1], [0], [0], [1], [0, 0, 1, 1], [], []>} : vector<8x8xf32>, vector<8x256xf32>, vector<8x256xf32> -> vector<8x256xf32>
    %c0_49 = arith.constant 0 : index
    %c768 = arith.constant 768 : index
    %50 = vector.load %arg10[%c0_49, %c768] : memref<8x1024xf32, #tpu.memory_space<vmem>>, vector<8x256xf32>
    tpu.vector_store %arg10[%c0_49, %c768], %49 {strides = array<i32>} : memref<8x1024xf32, #tpu.memory_space<vmem>>, vector<8x256xf32>,
    %c0_50 = arith.constant 0 : index
    %c0_51 = arith.constant 0 : index
    %51 = vector.load %arg10[%c0_50, %c0_51] : memref<8x1024xf32, #tpu.memory_space<vmem>>, vector<8x1024xf32>
    %cst_52 = arith.constant dense<0xFF800000> : vector<8xf32>
    %52 = vector.multi_reduction <maximumf>, %51, %cst_52 [1] : vector<8x1024xf32> to vector<8xf32>
    %53 = vector.shape_cast %52 : vector<8xf32> to vector<8x1xf32>
    %54 = vector.broadcast %53 : vector<8x1xf32> to vector<8x1024xf32>
    %55 = arith.subf %51, %54 : vector<8x1024xf32>
    %56 = math.exp %55 : vector<8x1024xf32>
    %cst_53 = arith.constant dense<0.000000e+00> : vector<8xf32>
    %57 = vector.multi_reduction <add>, %56, %cst_53 [1] : vector<8x1024xf32> to vector<8xf32>
    %58 = vector.shape_cast %57 : vector<8xf32> to vector<8x1xf32>
    %59 = tpu.reciprocal %58 : vector<8x1xf32> -> vector<8x1xf32>
    %60 = vector.broadcast %59 : vector<8x1xf32> to vector<8x1024xf32>
    %61 = arith.mulf %56, %60 : vector<8x1024xf32>
    %c0_54 = arith.constant 0 : index
    %c0_55 = arith.constant 0 : index
    %c0_56 = arith.constant 0 : index
    %62 = vector.load %arg8[%c0_54, %c0_55, %c0_56] : memref<1x8x1024xf32, #tpu.memory_space<vmem>>, vector<1x8x1024xf32>
    %63 = vector.shape_cast %62 : vector<1x8x1024xf32> to vector<8x1024xf32>
    %64 = vector.shape_cast %61 : vector<8x1024xf32> to vector<1x8x1024xf32>
    tpu.vector_store %arg8[%c0_54, %c0_55, %c0_56], %64 {strides = array<i32>} : memref<1x8x1024xf32, #tpu.memory_space<vmem>>, vector<1x8x1024xf32>,
    return
  }
  func.func @transform_0(%arg0: i32, %arg1: i32) -> (i32, i32, i32) {
    %c0_i32 = arith.constant 0 : i32
    %c0_i32_0 = arith.constant 0 : i32
    return %arg0, %arg1, %c0_i32 : i32, i32, i32
  }
  func.func @transform_1(%arg0: i32, %arg1: i32) -> (i32, i32, i32) {
    %c0_i32 = arith.constant 0 : i32
    %c0_i32_0 = arith.constant 0 : i32
    %c0_i32_1 = arith.constant 0 : i32
    return %arg0, %c0_i32, %c0_i32_0 : i32, i32, i32
  }
  func.func @transform_2(%arg0: i32, %arg1: i32) -> (i32, i32, i32) {
    %c0_i32 = arith.constant 0 : i32
    %c0_i32_0 = arith.constant 0 : i32
    %c0_i32_1 = arith.constant 0 : i32
    %c0_i32_2 = arith.constant 0 : i32
    return %c0_i32, %c0_i32_0, %c0_i32_1 : i32, i32, i32
  }
  func.func @transform_3(%arg0: i32, %arg1: i32) -> (i32, i32, i32) {
    %c0_i32 = arith.constant 0 : i32
    %c0_i32_0 = arith.constant 0 : i32
    %c0_i32_1 = arith.constant 0 : i32
    %c0_i32_2 = arith.constant 0 : i32
    return %c0_i32, %c0_i32_0, %c0_i32_1 : i32, i32, i32
  }
  func.func @transform_4(%arg0: i32, %arg1: i32) -> (i32, i32) {
    %c0_i32 = arith.constant 0 : i32
    %c0_i32_0 = arith.constant 0 : i32
    %c0_i32_1 = arith.constant 0 : i32
    return %c0_i32, %c0_i32_0 : i32, i32
  }
  func.func @transform_5(%arg0: i32, %arg1: i32) -> (i32, i32) {
    %c0_i32 = arith.constant 0 : i32
    %c0_i32_0 = arith.constant 0 : i32
    %c0_i32_1 = arith.constant 0 : i32
    return %c0_i32, %c0_i32_0 : i32, i32
  }
  func.func @transform_6(%arg0: i32, %arg1: i32) -> (i32, i32, i32) {
    %c0_i32 = arith.constant 0 : i32
    %c0_i32_0 = arith.constant 0 : i32
    return %arg0, %arg1, %c0_i32 : i32, i32, i32
  }
}

</mosaic_0001>

<llo_original>
// kernel: tpu_custom_call.1
$region0: #{tpu_custom_call.1}
  #allocation0 [shape = 'u32[]', space=smem, size = 0x4, offset = 0x4, fixed_abs, tag = 'smem constant byte address 0x4 - core index']
  #allocation1 [shape = 'u32[72,128]{1,0:T(1,128)}', space=vmem, size = 0x9000, scoped, tag = 'internal scratch']
  #allocation2 [shape = 'f32[32,256]{1,0:T(8,128)}', space=vmem, size = 0x8000, scoped, tag = 'scratch operand']
  #allocation3 [shape = 'f32[8,1024]{1,0:T(8,128)}', space=vmem, size = 0x8000, scoped, tag = 'scratch operand']
  %s0 = inlined_call_operand.hbm [shape: f32[2,8,32], index: 0, kind: input, shape index: {}]
  %s1 = inlined_call_operand.vmem [shape: f32[2,32,256], index: 1, kind: input, shape index: {}]
  %s2 = inlined_call_operand.vmem [shape: f32[4,32,8], index: 2, kind: input, shape index: {}]
  %s3 = inlined_call_operand.hbm [shape: f32[4,1,8], index: 3, kind: input, shape index: {}]
  %s4 = inlined_call_operand.vmem [shape: f32[32,32], index: 4, kind: input, shape index: {}]
  %s5 = inlined_call_operand.vmem [shape: f32[32,1], index: 5, kind: input, shape index: {}]
  %s6 = inlined_call_operand.hbm [shape: f32[2,8,1024], index: 6, kind: output, shape index: {}]
  %s7 = sld [smem:[#allocation0]]
  $region69: #{tpu_custom_call.1} parent=0
    _
  %s9 = ssub.s32 1, %s7
  %s10 = scalar_select 0, %s9, %s7
  $region1: #{tpu_custom_call.1} parent=0
    #allocation4 [shape = 'u8[8192]{0}', space=vmem, size = 0x2000, scoped, tag = 'input window, operand 0']
    #allocation5 [shape = 's32[2]{0}', space=sflag, size = 0x8, scoped, tag = 'scoped memory for tpu_custom_call.1']
    #allocation6 [shape = 's32[2]{0}', space=sflag, size = 0x8, scoped, tag = 'scoped memory for tpu_custom_call.1']
    #allocation7 [shape = 'u8[2048]{0}', space=vmem, size = 0x800, scoped, tag = 'input window, operand 3, single buffered']
    #allocation8 [shape = 's32[1]{0}', space=sflag, size = 0x4, scoped, tag = 'scoped memory for tpu_custom_call.1']
    #allocation9 [shape = 'u8[65536]{0}', space=vmem, size = 0x10000, scoped, tag = 'output window, operand 0']
    %11 = vsyncpa [#allocation5], 0
    %s12 = scalar_lea.sflag [#allocation5], 1
    %13 = vsyncpa %s12, 0
    %14 = vsyncpa [#allocation8], 0
    %15 = vsyncpa [#allocation6], 0
    %s16 = scalar_lea.sflag [#allocation6], 1
    %17 = vsyncpa %s16, 0
    loop: start=0, step=1, limit=4
    $region2: #{tpu_custom_call.1} parent=1 // loop_pre_header
      _
    $region3: #{tpu_custom_call.1} parent=1 // loop_header
      %s19 = sphi 0, %s23
      %p20 = scmp.ge.s32.totalorder %s19, 4
      %s26 = sphi 0, %s38
      %s27 = sphi 0, %s34
      %s28 = sphi 0, %s26
      %s29 = sphi 0, %s27
      %s30 = sphi 0, %s28
      %s31 = sphi 0, %s29
      %s43 = sphi 0, %s45
      %s46 = sphi 0, %s43
      %s47 = sphi 0, %s46
      %s63 = sphi 0, %s47
      %s69 = sphi 0, %s71
      %s72 = sphi 0, %s69
      %s73 = sphi 0, %s72
      %s89 = sphi 0, %s73
      %s93 = sphi 0, %s93
      %s95 = sphi 0, %s93
      %s96 = sphi 0, %s95
      %s110 = sphi 0, %s96
      %s114 = sphi 0, %s114
      %s116 = sphi 0, %s114
      %s117 = sphi 0, %s116
      %s131 = sphi 0, %s117
      %s135 = sphi 0, %s135
      %s137 = sphi 0, %s135
      %s138 = sphi 0, %s137
      %s152 = sphi 0, %s138
      %s156 = sphi 0, %s156
      %s158 = sphi 0, %s156
      %s159 = sphi 0, %s158
      %s173 = sphi 0, %s159
      %s181 = sphi 0, %s183
      %s184 = sphi 0, %s181
      %s185 = sphi 0, %s184
      %s201 = sphi 0, %s185
    $region4: #{tpu_custom_call.1} parent=1 // loop_header_branch
      %22 = sbr.rel (%p20) target = $region8
    $region5: #{tpu_custom_call.1} parent=1 // loop_body
      %s24 = ssub.s32 %s19, 1
      %s25 = ssub.s32 %s19, 2
      %s32 = sadd.s32 1, %s27
      %p33 = scmp.ge.s32.totalorder %s32, 1
      %s34 = scalar_select %p33, 0, %s32
      %s35 = sadd.s32 1, %s26
      %s36 = scalar_select %p33, %s35, %s26
      %p37 = scmp.ge.s32.totalorder %s36, 2
      %s38 = scalar_select %p37, 0, %s36
      %s39 = ssub.s32 %s26, %s38
      %s40 = ssub.s32 %s27, %s34
      %s41 = sor.u32 %s39, %s40
      %p42 = scmp.eq.s32.totalorder %s41, 0
      %s44 = sadd.s32 %s43, 1
      %s45 = scalar_select %p42, %s43, %s44
      %p48 = pneg %p42
      %p49 = scmp.eq.s32.totalorder %s19, 1
      %p50 = por %p48, %p49
      %p51 = scmp.ne.s32.totalorder %s43, %s46
      %p52 = scmp.eq.s32.totalorder %s19, 0
      %p53 = por %p51, %p52
      %p54 = scmp.ne.s32.totalorder %s43, %s46
      %p55 = scmp.eq.s32.totalorder %s24, 1
      %p56 = por %p54, %p55
      %p57 = scmp.ne.s32.totalorder %s46, %s47
      %p58 = scmp.eq.s32.totalorder %s24, 0
      %p59 = por %p57, %p58
      %p60 = scmp.ne.s32.totalorder %s46, %s47
      %p61 = scmp.eq.s32.totalorder %s25, 1
      %p62 = por %p60, %p61
      %p64 = scmp.ne.s32.totalorder %s47, %s63
      %p65 = scmp.eq.s32.totalorder %s25, 0
      %p66 = por %p64, %p65
      %s67 = ssub.s32 %s26, %s38
      %p68 = scmp.eq.s32.totalorder %s67, 0
      %s70 = sadd.s32 %s69, 1
      %s71 = scalar_select %p68, %s69, %s70
      %p74 = pneg %p68
      %p75 = scmp.eq.s32.totalorder %s19, 1
      %p76 = por %p74, %p75
      %p77 = scmp.ne.s32.totalorder %s69, %s72
      %p78 = scmp.eq.s32.totalorder %s19, 0
      %p79 = por %p77, %p78
      %p80 = scmp.ne.s32.totalorder %s69, %s72
      %p81 = scmp.eq.s32.totalorder %s24, 1
      %p82 = por %p80, %p81
      %p83 = scmp.ne.s32.totalorder %s72, %s73
      %p84 = scmp.eq.s32.totalorder %s24, 0
      %p85 = por %p83, %p84
      %p86 = scmp.ne.s32.totalorder %s72, %s73
      %p87 = scmp.eq.s32.totalorder %s25, 1
      %p88 = por %p86, %p87
      %p90 = scmp.ne.s32.totalorder %s73, %s89
      %p91 = scmp.eq.s32.totalorder %s25, 0
      %p92 = por %p90, %p91
      %s94 = sadd.s32 %s93, 1
      %p97 = scmp.eq.s32.totalorder %s19, 1
      %p98 = scmp.ne.s32.totalorder %s93, %s95
      %p99 = scmp.eq.s32.totalorder %s19, 0
      %p100 = por %p98, %p99
      %p101 = scmp.ne.s32.totalorder %s93, %s95
      %p102 = scmp.eq.s32.totalorder %s24, 1
      %p103 = por %p101, %p102
      %p104 = scmp.ne.s32.totalorder %s95, %s96
      %p105 = scmp.eq.s32.totalorder %s24, 0
      %p106 = por %p104, %p105
      %p107 = scmp.ne.s32.totalorder %s95, %s96
      %p108 = scmp.eq.s32.totalorder %s25, 1
      %p109 = por %p107, %p108
      %p111 = scmp.ne.s32.totalorder %s96, %s110
      %p112 = scmp.eq.s32.totalorder %s25, 0
      %p113 = por %p111, %p112
      %s115 = sadd.s32 %s114, 1
      %p118 = scmp.eq.s32.totalorder %s19, 1
      %p119 = scmp.ne.s32.totalorder %s114, %s116
      %p120 = scmp.eq.s32.totalorder %s19, 0
      %p121 = por %p119, %p120
      %p122 = scmp.ne.s32.totalorder %s114, %s116
      %p123 = scmp.eq.s32.totalorder %s24, 1
      %p124 = por %p122, %p123
      %p125 = scmp.ne.s32.totalorder %s116, %s117
      %p126 = scmp.eq.s32.totalorder %s24, 0
      %p127 = por %p125, %p126
      %p128 = scmp.ne.s32.totalorder %s116, %s117
      %p129 = scmp.eq.s32.totalorder %s25, 1
      %p130 = por %p128, %p129
      %p132 = scmp.ne.s32.totalorder %s117, %s131
      %p133 = scmp.eq.s32.totalorder %s25, 0
      %p134 = por %p132, %p133
      %s136 = sadd.s32 %s135, 1
      %p139 = scmp.eq.s32.totalorder %s19, 1
      %p140 = scmp.ne.s32.totalorder %s135, %s137
      %p141 = scmp.eq.s32.totalorder %s19, 0
      %p142 = por %p140, %p141
      %p143 = scmp.ne.s32.totalorder %s135, %s137
      %p144 = scmp.eq.s32.totalorder %s24, 1
      %p145 = por %p143, %p144
      %p146 = scmp.ne.s32.totalorder %s137, %s138
      %p147 = scmp.eq.s32.totalorder %s24, 0
      %p148 = por %p146, %p147
      %p149 = scmp.ne.s32.totalorder %s137, %s138
      %p150 = scmp.eq.s32.totalorder %s25, 1
      %p151 = por %p149, %p150
      %p153 = scmp.ne.s32.totalorder %s138, %s152
      %p154 = scmp.eq.s32.totalorder %s25, 0
      %p155 = por %p153, %p154
      %s157 = sadd.s32 %s156, 1
      %p160 = scmp.eq.s32.totalorder %s19, 1
      %p161 = scmp.ne.s32.totalorder %s156, %s158
      %p162 = scmp.eq.s32.totalorder %s19, 0
      %p163 = por %p161, %p162
      %p164 = scmp.ne.s32.totalorder %s156, %s158
      %p165 = scmp.eq.s32.totalorder %s24, 1
      %p166 = por %p164, %p165
      %p167 = scmp.ne.s32.totalorder %s158, %s159
      %p168 = scmp.eq.s32.totalorder %s24, 0
      %p169 = por %p167, %p168
      %p170 = scmp.ne.s32.totalorder %s158, %s159
      %p171 = scmp.eq.s32.totalorder %s25, 1
      %p172 = por %p170, %p171
      %p174 = scmp.ne.s32.totalorder %s159, %s173
      %p175 = scmp.eq.s32.totalorder %s25, 0
      %p176 = por %p174, %p175
      %s177 = ssub.s32 %s26, %s38
      %s178 = ssub.s32 %s27, %s34
      %s179 = sor.u32 %s177, %s178
      %p180 = scmp.eq.s32.totalorder %s179, 0
      %s182 = sadd.s32 %s181, 1
      %s183 = scalar_select %p180, %s181, %s182
      %p186 = pneg %p180
      %p187 = scmp.eq.s32.totalorder %s19, 1
      %p188 = por %p186, %p187
      %p189 = scmp.ne.s32.totalorder %s181, %s184
      %p190 = scmp.eq.s32.totalorder %s19, 0
      %p191 = por %p189, %p190
      %p192 = scmp.ne.s32.totalorder %s181, %s184
      %p193 = scmp.eq.s32.totalorder %s24, 1
      %p194 = por %p192, %p193
      %p195 = scmp.ne.s32.totalorder %s184, %s185
      %p196 = scmp.eq.s32.totalorder %s24, 0
      %p197 = por %p195, %p196
      %p198 = scmp.ne.s32.totalorder %s184, %s185
      %p199 = scmp.eq.s32.totalorder %s25, 1
      %p200 = por %p198, %p199
      %p202 = scmp.ne.s32.totalorder %s185, %s201
      %p203 = scmp.eq.s32.totalorder %s25, 0
      %p204 = por %p202, %p203
      %p205 = scmp.le.s32.totalorder 1, %s19
      %p206 = scmp.lt.s32.totalorder %s19, 3
      %p207 = pnand %p205, %p206
      %p208 = pneg %p207
      // Predicated region
      $region9: #{tpu_custom_call.1} parent=5 // pred_check
        _
      $region10: #{tpu_custom_call.1} parent=5 // pred_check_branch
        %210 = sbr.rel (%p207) target = $region12
      $region11: #{tpu_custom_call.1} parent=5 // pred_region
        %s211 = ssub.s32 %s19, 1
        // Predicated region
        $region13: #{tpu_custom_call.1} parent=11 // pred_check
          %p212 = pneg %p106
        $region14: #{tpu_custom_call.1} parent=11 // pred_check_branch
          %214 = sbr.rel (%p212) target = $region16
        $region15: #{tpu_custom_call.1} parent=11 // pred_region
          _
        $region16: #{tpu_custom_call.1} parent=11 // pred_fallthru
          _
        // Predicated region
        $region17: #{tpu_custom_call.1} parent=11 // pred_check
          %p215 = pneg %p127
        $region18: #{tpu_custom_call.1} parent=11 // pred_check_branch
          %217 = sbr.rel (%p215) target = $region20
        $region19: #{tpu_custom_call.1} parent=11 // pred_region
          %219 = vsyncadd [#allocation8], 0
          %s220 = sshll.u32 %s3, 4
          %s221 = int_to_ptr.hbm [resolvable:$true] %s220
          %s222 = sshll.u32 [#allocation7], 4
          %s223 = int_to_ptr.vmem [resolvable:$true] %s222
          %228 = dma.hbm_to_vmem [thread:$0]  %s221, 64, %s223, [#allocation8], 16, 16, 1
        $region20: #{tpu_custom_call.1} parent=11 // pred_fallthru
          _
        // Predicated region
        $region21: #{tpu_custom_call.1} parent=11 // pred_check
          %p229 = pneg %p148
        $region22: #{tpu_custom_call.1} parent=11 // pred_check_branch
          %231 = sbr.rel (%p229) target = $region24
        $region23: #{tpu_custom_call.1} parent=11 // pred_region
          _
        $region24: #{tpu_custom_call.1} parent=11 // pred_fallthru
          _
        // Predicated region
        $region25: #{tpu_custom_call.1} parent=11 // pred_check
          %p232 = pneg %p169
        $region26: #{tpu_custom_call.1} parent=11 // pred_check_branch
          %234 = sbr.rel (%p232) target = $region28
        $region27: #{tpu_custom_call.1} parent=11 // pred_region
          _
        $region28: #{tpu_custom_call.1} parent=11 // pred_fallthru
          _
      $region12: #{tpu_custom_call.1} parent=5 // pred_fallthru
        _
      %p235 = scmp.lt.s32.totalorder %s19, 2
      // Predicated region
      $region29: #{tpu_custom_call.1} parent=5 // pred_check
        %p236 = pneg %p235
      $region30: #{tpu_custom_call.1} parent=5 // pred_check_branch
        %238 = sbr.rel (%p236) target = $region32
      $region31: #{tpu_custom_call.1} parent=5 // pred_region
        // Predicated region
        $region33: #{tpu_custom_call.1} parent=31 // pred_check
          %p239 = pneg %p53
        $region34: #{tpu_custom_call.1} parent=31 // pred_check_branch
          %241 = sbr.rel (%p239) target = $region36
        $region35: #{tpu_custom_call.1} parent=31 // pred_region
          %s242 = sand.u32 %s43, 1
          %s243 = scalar_lea.sflag [#allocation5], %s242
          %s244 = sand.u32 %s43, 1
          %s245 = smul.addr %s244, 8
          %s246 = scalar_lea.vmem [#allocation4], %s245
          %248 = vsyncadd %s243, 0
          %s249 = sadd.s32 %s27, %s26
          %s250 = smul.addr %s249, 8
          %s251 = scalar_lea.hbm %s0, %s250
          %s253 = sshll.u32 %s251, 4
          %s254 = int_to_ptr.hbm [resolvable:$true] %s253
          %s255 = sshll.u32 %s246, 4
          %s256 = int_to_ptr.vmem [resolvable:$true] %s255
          %258 = dma.hbm_to_vmem [thread:$0]  %s254, 128, %s256, %s243
        $region36: #{tpu_custom_call.1} parent=31 // pred_fallthru
          _
        // Predicated region
        $region37: #{tpu_custom_call.1} parent=31 // pred_check
          %p259 = pneg %p79
        $region38: #{tpu_custom_call.1} parent=31 // pred_check_branch
          %261 = sbr.rel (%p259) target = $region40
        $region39: #{tpu_custom_call.1} parent=31 // pred_region
          %p262 = scmp.lt.s32.totalorder %s26, 1
          %s263 = scalar_select %p262, %s26, 1
          %s264 = smul.addr %s263, 8
          %s265 = smul.addr %s264, 8
          %s266 = scalar_lea.vmem %s1, %s265
        $region40: #{tpu_custom_call.1} parent=31 // pred_fallthru
          _
      $region32: #{tpu_custom_call.1} parent=5 // pred_fallthru
        _
      %p267 = scmp.le.s32.totalorder 1, %s19
      %p268 = scmp.lt.s32.totalorder %s19, 3
      %p269 = pnand %p267, %p268
      %p270 = pneg %p269
      // Predicated region
      $region41: #{tpu_custom_call.1} parent=5 // pred_check
        _
      $region42: #{tpu_custom_call.1} parent=5 // pred_check_branch
        %272 = sbr.rel (%p269) target = $region44
      $region43: #{tpu_custom_call.1} parent=5 // pred_region
        %s273 = ssub.s32 %s19, 1
        %s274 = sand.u32 %s46, 1
        %s275 = scalar_lea.sflag [#allocation5], %s274
        %s276 = sand.u32 %s46, 1
        %s277 = smul.addr %s276, 8
        %s278 = scalar_lea.vmem [#allocation4], %s277
        // Predicated region
        $region45: #{tpu_custom_call.1} parent=43 // pred_check
          %p279 = pneg %p59
        $region46: #{tpu_custom_call.1} parent=43 // pred_check_branch
          %281 = sbr.rel (%p279) target = $region48
        $region47: #{tpu_custom_call.1} parent=43 // pred_region
          %283 = dma.done %s275, 128
        $region48: #{tpu_custom_call.1} parent=43 // pred_fallthru
          _
        // Predicated region
        $region49: #{tpu_custom_call.1} parent=43 // pred_check
          %p284 = pneg %p127
        $region50: #{tpu_custom_call.1} parent=43 // pred_check_branch
          %286 = sbr.rel (%p284) target = $region52
        $region51: #{tpu_custom_call.1} parent=43 // pred_region
          %288 = dma.done [#allocation8], 64
        $region52: #{tpu_custom_call.1} parent=43 // pred_fallthru
          _
        %s289 = sand.u32 %s46, 1
        %s290 = scalar_lea.sflag [#allocation5], %s289
        %s291 = sand.u32 %s46, 1
        %s292 = smul.addr %s291, 8
        %s293 = scalar_lea.vmem [#allocation4], %s292
        %p294 = pneg %p59
        %p295 = pneg %p56
        %p296 = scmp.lt.s32.totalorder %s28, 1
        %s297 = scalar_select %p296, %s28, 1
        %s298 = smul.addr %s297, 8
        %s299 = smul.addr %s298, 8
        %s300 = scalar_lea.vmem %s1, %s299
        %p301 = pneg %p85
        %p302 = pneg %p82
        %p303 = pneg %p106
        %p304 = pneg %p103
        %p305 = pneg %p127
        %p306 = pneg %p124
        %p307 = pneg %p148
        %p308 = pneg %p145
        %p309 = pneg %p169
        %p310 = pneg %p166
        %p311 = pneg %p197
        %p312 = pneg %p194
        %s313 = sand.u32 %s184, 1
        %s314 = scalar_lea.sflag [#allocation6], %s313
        %s315 = sand.u32 %s184, 1
        %s316 = smul.addr %s315, 64
        %s317 = scalar_lea.vmem [#allocation9], %s316
        %p318 = scmp.lt.s32.totalorder %s28, 1
        %s319 = scalar_select %p318, %s28, 1
        %s320 = smul.addr %s319, 8
        %s321 = smul.addr %s320, 8
        %s322 = scalar_lea.vmem %s1, %s321
        %p323 = scmp.eq.s32.totalorder %s29, 0
        // Predicated region
        $region53: #{tpu_custom_call.1} parent=43 // pred_check
          %p324 = pneg %p323
        $region54: #{tpu_custom_call.1} parent=43 // pred_check_branch
          %326 = sbr.rel (%p324) target = $region56
        $region55: #{tpu_custom_call.1} parent=43 // pred_region
          %v327 = vld [vmem:[%s4] sm:$0xff]
          %v328 = vld [vmem:[%s4 + $0x8] sm:$0xff]
          %v329 = vld [vmem:[%s4 + $0x10] sm:$0xff]
          %v330 = vld [vmem:[%s4 + $0x18] sm:$0xff]
          %v331 = vld [vmem:[%s322] sm:$0xff]
          %v332 = vld [vmem:[%s322 + $0x8] sm:$0xff]
          %v333 = vld [vmem:[%s322 + $0x10] sm:$0xff]
          %v334 = vld [vmem:[%s322 + $0x18] sm:$0xff]
          %v335 = vld [vmem:[%s322 + $0x20] sm:$0xff]
          %v336 = vld [vmem:[%s322 + $0x28] sm:$0xff]
          %v337 = vld [vmem:[%s322 + $0x30] sm:$0xff]
          %v338 = vld [vmem:[%s322 + $0x38] sm:$0xff]
          %v339 = vld [vmem:[%s5] sm:$0xff]
          %v340 = vld [vmem:[%s5 + $0x8] sm:$0xff]
          %v341 = vld [vmem:[%s5 + $0x10] sm:$0xff]
          %v342 = vld [vmem:[%s5 + $0x18] sm:$0xff]
          %344 = vset.pattern.permute.xlu0 0
          %345 = vperm.xlu0 %344, %v339
          %v346 = vpop.permute.xlu0 %345
          %349 = vset.pattern.permute.xlu0 0
          %350 = vperm.xlu0 %349, %v340
          %v351 = vpop.permute.xlu0 %350
          %354 = vset.pattern.permute.xlu0 0
          %355 = vperm.xlu0 %354, %v341
          %v356 = vpop.permute.xlu0 %355
          %359 = vset.pattern.permute.xlu0 0
          %360 = vperm.xlu0 %359, %v342
          %v361 = vpop.permute.xlu0 %360
          %vm363 = vcmask 261120
          %v365 = vsel %vm363, %v327, 0
          %v368 = vsel %vm363, %v328, 0
          %v371 = vsel %vm363, %v329, 0
          %v374 = vsel %vm363, %v330, 0
          %376 = vmatpush.msra.mxu0 0.0
          %377 = vmatpush.msra.mxu0 0.0
          %378 = vmatpush.msra.mxu0 0.0
          %379 = vmatpush.msra.mxu0 0.0
          %380 = vmatpush.msra.mxu0 0.0
          %381 = vmatpush.msra.mxu0 0.0
          %382 = vmatpush.msra.mxu0 0.0
          %383 = vmatpush.msra.mxu0 0.0
          %384 = vmatpush.msra.mxu0 0.0
          %385 = vmatpush.msra.mxu0 0.0
          %386 = vmatpush.msra.mxu0 0.0
          %387 = vmatpush.msra.mxu0 0.0
          %388 = vmatpush.msra.mxu0 %v337
          %389 = vmatpush.msra.mxu0 %v335
          %390 = vmatpush.msra.mxu0 %v333
          %391 = vmatpush.msra.mxu0 %v331
          %392 = vmatmul.f32.gmra.mxu0 %v365
          %v393 = vpop.f32.mrf.mxu0
          %v394 = vadd.f32 %v346, %v393
          %395 = vmatmul.f32.gmra.mxu0 %v368
          %v396 = vpop.f32.mrf.mxu0
          %v397 = vadd.f32 %v351, %v396
          %398 = vmatmul.f32.gmra.mxu0 %v371
          %v399 = vpop.f32.mrf.mxu0
          %v400 = vadd.f32 %v356, %v399
          %401 = vmatmul.f32.gmra.mxu0 %v374
          %v402 = vpop.f32.mrf.mxu0
          %v403 = vadd.f32 %v361, %v402
          %404 = vdwg.mxu0
          %405 = vmatpush.msra.mxu0 0.0
          %406 = vmatpush.msra.mxu0 0.0
          %407 = vmatpush.msra.mxu0 0.0
          %408 = vmatpush.msra.mxu0 0.0
          %409 = vmatpush.msra.mxu0 0.0
          %410 = vmatpush.msra.mxu0 0.0
          %411 = vmatpush.msra.mxu0 0.0
          %412 = vmatpush.msra.mxu0 0.0
          %413 = vmatpush.msra.mxu0 0.0
          %414 = vmatpush.msra.mxu0 0.0
          %415 = vmatpush.msra.mxu0 0.0
          %416 = vmatpush.msra.mxu0 0.0
          %417 = vmatpush.msra.mxu0 %v338
          %418 = vmatpush.msra.mxu0 %v336
          %419 = vmatpush.msra.mxu0 %v334
          %420 = vmatpush.msra.mxu0 %v332
          %421 = vmatmul.f32.gmra.mxu0 %v365
          %v422 = vpop.f32.mrf.mxu0
          %v423 = vadd.f32 %v346, %v422
          %424 = vmatmul.f32.gmra.mxu0 %v368
          %v425 = vpop.f32.mrf.mxu0
          %v426 = vadd.f32 %v351, %v425
          %427 = vmatmul.f32.gmra.mxu0 %v371
          %v428 = vpop.f32.mrf.mxu0
          %v429 = vadd.f32 %v356, %v428
          %430 = vmatmul.f32.gmra.mxu0 %v374
          %v431 = vpop.f32.mrf.mxu0
          %v432 = vadd.f32 %v361, %v431
          %433 = vdwg.mxu0
          %434 = vst [vmem:[#allocation2] sm:$0xff] %v394
          %435 = vst [vmem:[#allocation2 + $0x8] sm:$0xff] %v423
          %436 = vst [vmem:[#allocation2 + $0x10] sm:$0xff] %v397
          %437 = vst [vmem:[#allocation2 + $0x18] sm:$0xff] %v426
          %438 = vst [vmem:[#allocation2 + $0x20] sm:$0xff] %v400
          %439 = vst [vmem:[#allocation2 + $0x28] sm:$0xff] %v429
          %440 = vst [vmem:[#allocation2 + $0x30] sm:$0xff] %v403
          %441 = vst [vmem:[#allocation2 + $0x38] sm:$0xff] %v432
        $region56: #{tpu_custom_call.1} parent=43 // pred_fallthru
          _
        %v442 = vld [vmem:[%s278] sm:$0xff]
        %v443 = vld [vmem:[%s2] sm:$0xff]
        %v444 = vld [vmem:[%s2 + $0x8] sm:$0xff]
        %v445 = vld [vmem:[%s2 + $0x10] sm:$0xff]
        %v446 = vld [vmem:[%s2 + $0x18] sm:$0xff]
        %v447 = vld [vmem:[#allocation7] sm:$0x1]
        %v449 = vperm.slane %v447, 0
        %vm451 = vcmask 261120
        %v453 = vsel %vm451, %v442, 0
        %455 = vmatpush.msra.mxu0 0.0
        %456 = vmatpush.msra.mxu0 0.0
        %457 = vmatpush.msra.mxu0 0.0
        %458 = vmatpush.msra.mxu0 0.0
        %459 = vmatpush.msra.mxu0 0.0
        %460 = vmatpush.msra.mxu0 0.0
        %461 = vmatpush.msra.mxu0 0.0
        %462 = vmatpush.msra.mxu0 0.0
        %463 = vmatpush.msra.mxu0 0.0
        %464 = vmatpush.msra.mxu0 0.0
        %465 = vmatpush.msra.mxu0 0.0
        %466 = vmatpush.msra.mxu0 0.0
        %467 = vmatpush.msra.mxu0 %v446
        %468 = vmatpush.msra.mxu0 %v445
        %469 = vmatpush.msra.mxu0 %v444
        %470 = vmatpush.msra.mxu0 %v443
        %471 = vmatmul.f32.gmra.mxu0 %v453
        %v472 = vpop.f32.mrf.mxu0
        %v473 = vadd.f32 %v449, %v472
        %474 = vdwg.mxu0
        %v475 = vld [vmem:[#allocation2] sm:$0xff]
        %v476 = vld [vmem:[#allocation2 + $0x8] sm:$0xff]
        %vm477 = vcmask 64512
        %v479 = vsel %vm477, %v473, 0
        %481 = vmatpush.msra.mxu0 0.0
        %482 = vmatpush.msra.mxu0 0.0
        %483 = vmatpush.msra.mxu0 0.0
        %484 = vmatpush.msra.mxu0 0.0
        %485 = vmatpush.msra.mxu0 0.0
        %486 = vmatpush.msra.mxu0 0.0
        %487 = vmatpush.msra.mxu0 0.0
        %488 = vmatpush.msra.mxu0 0.0
        %489 = vmatpush.msra.mxu0 0.0
        %490 = vmatpush.msra.mxu0 0.0
        %491 = vmatpush.msra.mxu0 0.0
        %492 = vmatpush.msra.mxu0 0.0
        %493 = vmatpush.msra.mxu0 0.0
        %494 = vmatpush.msra.mxu0 0.0
        %495 = vmatpush.msra.mxu0 0.0
        %496 = vmatpush.msra.mxu0 %v475
        %497 = vmatmul.f32.gmra.mxu0 %v479
        %v498 = vpop.f32.mrf.mxu0
        %v499 = vadd.f32 0.0, %v498
        %500 = vdwg.mxu0
        %501 = vmatpush.msra.mxu0 0.0
        %502 = vmatpush.msra.mxu0 0.0
        %503 = vmatpush.msra.mxu0 0.0
        %504 = vmatpush.msra.mxu0 0.0
        %505 = vmatpush.msra.mxu0 0.0
        %506 = vmatpush.msra.mxu0 0.0
        %507 = vmatpush.msra.mxu0 0.0
        %508 = vmatpush.msra.mxu0 0.0
        %509 = vmatpush.msra.mxu0 0.0
        %510 = vmatpush.msra.mxu0 0.0
        %511 = vmatpush.msra.mxu0 0.0
        %512 = vmatpush.msra.mxu0 0.0
        %513 = vmatpush.msra.mxu0 0.0
        %514 = vmatpush.msra.mxu0 0.0
        %515 = vmatpush.msra.mxu0 0.0
        %516 = vmatpush.msra.mxu0 %v476
        %517 = vmatmul.f32.gmra.mxu0 %v479
        %v518 = vpop.f32.mrf.mxu0
        %v519 = vadd.f32 0.0, %v518
        %520 = vdwg.mxu0
        %521 = vst [vmem:[#allocation3] sm:$0xff] %v499
        %522 = vst [vmem:[#allocation3 + $0x8] sm:$0xff] %v519
        %v523 = vld [vmem:[%s278] sm:$0xff]
        %s524 = scalar_lea.vmem %s2, 32
        %v525 = vld [vmem:[%s524] sm:$0xff]
        %v526 = vld [vmem:[%s524 + $0x8] sm:$0xff]
        %v527 = vld [vmem:[%s524 + $0x10] sm:$0xff]
        %v528 = vld [vmem:[%s524 + $0x18] sm:$0xff]
        %s529 = scalar_lea.vmem [#allocation7], 1
        %v530 = vld [vmem:[%s529] sm:$0x1]
        %v532 = vperm.slane %v530, 0
        %v535 = vsel %vm451, %v523, 0
        %537 = vmatpush.msra.mxu0 0.0
        %538 = vmatpush.msra.mxu0 0.0
        %539 = vmatpush.msra.mxu0 0.0
        %540 = vmatpush.msra.mxu0 0.0
        %541 = vmatpush.msra.mxu0 0.0
        %542 = vmatpush.msra.mxu0 0.0
        %543 = vmatpush.msra.mxu0 0.0
        %544 = vmatpush.msra.mxu0 0.0
        %545 = vmatpush.msra.mxu0 0.0
        %546 = vmatpush.msra.mxu0 0.0
        %547 = vmatpush.msra.mxu0 0.0
        %548 = vmatpush.msra.mxu0 0.0
        %549 = vmatpush.msra.mxu0 %v528
        %550 = vmatpush.msra.mxu0 %v527
        %551 = vmatpush.msra.mxu0 %v526
        %552 = vmatpush.msra.mxu0 %v525
        %553 = vmatmul.f32.gmra.mxu0 %v535
        %v554 = vpop.f32.mrf.mxu0
        %v555 = vadd.f32 %v532, %v554
        %556 = vdwg.mxu0
        %v557 = vld [vmem:[#allocation2 + $0x10] sm:$0xff]
        %v558 = vld [vmem:[#allocation2 + $0x18] sm:$0xff]
        %v560 = vsel %vm477, %v555, 0
        %562 = vmatpush.msra.mxu0 0.0
        %563 = vmatpush.msra.mxu0 0.0
        %564 = vmatpush.msra.mxu0 0.0
        %565 = vmatpush.msra.mxu0 0.0
        %566 = vmatpush.msra.mxu0 0.0
        %567 = vmatpush.msra.mxu0 0.0
        %568 = vmatpush.msra.mxu0 0.0
        %569 = vmatpush.msra.mxu0 0.0
        %570 = vmatpush.msra.mxu0 0.0
        %571 = vmatpush.msra.mxu0 0.0
        %572 = vmatpush.msra.mxu0 0.0
        %573 = vmatpush.msra.mxu0 0.0
        %574 = vmatpush.msra.mxu0 0.0
        %575 = vmatpush.msra.mxu0 0.0
        %576 = vmatpush.msra.mxu0 0.0
        %577 = vmatpush.msra.mxu0 %v557
        %578 = vmatmul.f32.gmra.mxu0 %v560
        %v579 = vpop.f32.mrf.mxu0
        %v580 = vadd.f32 0.0, %v579
        %581 = vdwg.mxu0
        %582 = vmatpush.msra.mxu0 0.0
        %583 = vmatpush.msra.mxu0 0.0
        %584 = vmatpush.msra.mxu0 0.0
        %585 = vmatpush.msra.mxu0 0.0
        %586 = vmatpush.msra.mxu0 0.0
        %587 = vmatpush.msra.mxu0 0.0
        %588 = vmatpush.msra.mxu0 0.0
        %589 = vmatpush.msra.mxu0 0.0
        %590 = vmatpush.msra.mxu0 0.0
        %591 = vmatpush.msra.mxu0 0.0
        %592 = vmatpush.msra.mxu0 0.0
        %593 = vmatpush.msra.mxu0 0.0
        %594 = vmatpush.msra.mxu0 0.0
        %595 = vmatpush.msra.mxu0 0.0
        %596 = vmatpush.msra.mxu0 0.0
        %597 = vmatpush.msra.mxu0 %v558
        %598 = vmatmul.f32.gmra.mxu0 %v560
        %v599 = vpop.f32.mrf.mxu0
        %v600 = vadd.f32 0.0, %v599
        %601 = vdwg.mxu0
        %602 = vst [vmem:[#allocation3 + $0x10] sm:$0xff] %v580
        %603 = vst [vmem:[#allocation3 + $0x18] sm:$0xff] %v600
        %v604 = vld [vmem:[%s278] sm:$0xff]
        %s605 = scalar_lea.vmem %s2, 64
        %v606 = vld [vmem:[%s605] sm:$0xff]
        %v607 = vld [vmem:[%s605 + $0x8] sm:$0xff]
        %v608 = vld [vmem:[%s605 + $0x10] sm:$0xff]
        %v609 = vld [vmem:[%s605 + $0x18] sm:$0xff]
        %s610 = scalar_lea.vmem [#allocation7], 2
        %v611 = vld [vmem:[%s610] sm:$0x1]
        %v613 = vperm.slane %v611, 0
        %v616 = vsel %vm451, %v604, 0
        %618 = vmatpush.msra.mxu0 0.0
        %619 = vmatpush.msra.mxu0 0.0
        %620 = vmatpush.msra.mxu0 0.0
        %621 = vmatpush.msra.mxu0 0.0
        %622 = vmatpush.msra.mxu0 0.0
        %623 = vmatpush.msra.mxu0 0.0
        %624 = vmatpush.msra.mxu0 0.0
        %625 = vmatpush.msra.mxu0 0.0
        %626 = vmatpush.msra.mxu0 0.0
        %627 = vmatpush.msra.mxu0 0.0
        %628 = vmatpush.msra.mxu0 0.0
        %629 = vmatpush.msra.mxu0 0.0
        %630 = vmatpush.msra.mxu0 %v609
        %631 = vmatpush.msra.mxu0 %v608
        %632 = vmatpush.msra.mxu0 %v607
        %633 = vmatpush.msra.mxu0 %v606
        %634 = vmatmul.f32.gmra.mxu0 %v616
        %v635 = vpop.f32.mrf.mxu0
        %v636 = vadd.f32 %v613, %v635
        %637 = vdwg.mxu0
        %v638 = vld [vmem:[#allocation2 + $0x20] sm:$0xff]
        %v639 = vld [vmem:[#allocation2 + $0x28] sm:$0xff]
        %v641 = vsel %vm477, %v636, 0
        %643 = vmatpush.msra.mxu0 0.0
        %644 = vmatpush.msra.mxu0 0.0
        %645 = vmatpush.msra.mxu0 0.0
        %646 = vmatpush.msra.mxu0 0.0
        %647 = vmatpush.msra.mxu0 0.0
        %648 = vmatpush.msra.mxu0 0.0
        %649 = vmatpush.msra.mxu0 0.0
        %650 = vmatpush.msra.mxu0 0.0
        %651 = vmatpush.msra.mxu0 0.0
        %652 = vmatpush.msra.mxu0 0.0
        %653 = vmatpush.msra.mxu0 0.0
        %654 = vmatpush.msra.mxu0 0.0
        %655 = vmatpush.msra.mxu0 0.0
        %656 = vmatpush.msra.mxu0 0.0
        %657 = vmatpush.msra.mxu0 0.0
        %658 = vmatpush.msra.mxu0 %v638
        %659 = vmatmul.f32.gmra.mxu0 %v641
        %v660 = vpop.f32.mrf.mxu0
        %v661 = vadd.f32 0.0, %v660
        %662 = vdwg.mxu0
        %663 = vmatpush.msra.mxu0 0.0
        %664 = vmatpush.msra.mxu0 0.0
        %665 = vmatpush.msra.mxu0 0.0
        %666 = vmatpush.msra.mxu0 0.0
        %667 = vmatpush.msra.mxu0 0.0
        %668 = vmatpush.msra.mxu0 0.0
        %669 = vmatpush.msra.mxu0 0.0
        %670 = vmatpush.msra.mxu0 0.0
        %671 = vmatpush.msra.mxu0 0.0
        %672 = vmatpush.msra.mxu0 0.0
        %673 = vmatpush.msra.mxu0 0.0
        %674 = vmatpush.msra.mxu0 0.0
        %675 = vmatpush.msra.mxu0 0.0
        %676 = vmatpush.msra.mxu0 0.0
        %677 = vmatpush.msra.mxu0 0.0
        %678 = vmatpush.msra.mxu0 %v639
        %679 = vmatmul.f32.gmra.mxu0 %v641
        %v680 = vpop.f32.mrf.mxu0
        %v681 = vadd.f32 0.0, %v680
        %682 = vdwg.mxu0
        %683 = vst [vmem:[#allocation3 + $0x20] sm:$0xff] %v661
        %684 = vst [vmem:[#allocation3 + $0x28] sm:$0xff] %v681
        %v685 = vld [vmem:[%s278] sm:$0xff]
        %s686 = scalar_lea.vmem %s2, 96
        %v687 = vld [vmem:[%s686] sm:$0xff]
        %v688 = vld [vmem:[%s686 + $0x8] sm:$0xff]
        %v689 = vld [vmem:[%s686 + $0x10] sm:$0xff]
        %v690 = vld [vmem:[%s686 + $0x18] sm:$0xff]
        %s691 = scalar_lea.vmem [#allocation7], 3
        %v692 = vld [vmem:[%s691] sm:$0x1]
        %v694 = vperm.slane %v692, 0
        %v697 = vsel %vm451, %v685, 0
        %699 = vmatpush.msra.mxu0 0.0
        %700 = vmatpush.msra.mxu0 0.0
        %701 = vmatpush.msra.mxu0 0.0
        %702 = vmatpush.msra.mxu0 0.0
        %703 = vmatpush.msra.mxu0 0.0
        %704 = vmatpush.msra.mxu0 0.0
        %705 = vmatpush.msra.mxu0 0.0
        %706 = vmatpush.msra.mxu0 0.0
        %707 = vmatpush.msra.mxu0 0.0
        %708 = vmatpush.msra.mxu0 0.0
        %709 = vmatpush.msra.mxu0 0.0
        %710 = vmatpush.msra.mxu0 0.0
        %711 = vmatpush.msra.mxu0 %v690
        %712 = vmatpush.msra.mxu0 %v689
        %713 = vmatpush.msra.mxu0 %v688
        %714 = vmatpush.msra.mxu0 %v687
        %715 = vmatmul.f32.gmra.mxu0 %v697
        %v716 = vpop.f32.mrf.mxu0
        %v717 = vadd.f32 %v694, %v716
        %718 = vdwg.mxu0
        %v719 = vld [vmem:[#allocation2 + $0x30] sm:$0xff]
        %v720 = vld [vmem:[#allocation2 + $0x38] sm:$0xff]
        %v722 = vsel %vm477, %v717, 0
        %724 = vmatpush.msra.mxu0 0.0
        %725 = vmatpush.msra.mxu0 0.0
        %726 = vmatpush.msra.mxu0 0.0
        %727 = vmatpush.msra.mxu0 0.0
        %728 = vmatpush.msra.mxu0 0.0
        %729 = vmatpush.msra.mxu0 0.0
        %730 = vmatpush.msra.mxu0 0.0
        %731 = vmatpush.msra.mxu0 0.0
        %732 = vmatpush.msra.mxu0 0.0
        %733 = vmatpush.msra.mxu0 0.0
        %734 = vmatpush.msra.mxu0 0.0
        %735 = vmatpush.msra.mxu0 0.0
        %736 = vmatpush.msra.mxu0 0.0
        %737 = vmatpush.msra.mxu0 0.0
        %738 = vmatpush.msra.mxu0 0.0
        %739 = vmatpush.msra.mxu0 %v719
        %740 = vmatmul.f32.gmra.mxu0 %v722
        %v741 = vpop.f32.mrf.mxu0
        %v742 = vadd.f32 0.0, %v741
        %743 = vdwg.mxu0
        %744 = vmatpush.msra.mxu0 0.0
        %745 = vmatpush.msra.mxu0 0.0
        %746 = vmatpush.msra.mxu0 0.0
        %747 = vmatpush.msra.mxu0 0.0
        %748 = vmatpush.msra.mxu0 0.0
        %749 = vmatpush.msra.mxu0 0.0
        %750 = vmatpush.msra.mxu0 0.0
        %751 = vmatpush.msra.mxu0 0.0
        %752 = vmatpush.msra.mxu0 0.0
        %753 = vmatpush.msra.mxu0 0.0
        %754 = vmatpush.msra.mxu0 0.0
        %755 = vmatpush.msra.mxu0 0.0
        %756 = vmatpush.msra.mxu0 0.0
        %757 = vmatpush.msra.mxu0 0.0
        %758 = vmatpush.msra.mxu0 0.0
        %759 = vmatpush.msra.mxu0 %v720
        %760 = vmatmul.f32.gmra.mxu0 %v722
        %v761 = vpop.f32.mrf.mxu0
        %v762 = vadd.f32 0.0, %v761
        %763 = vdwg.mxu0
        %764 = vst [vmem:[#allocation3 + $0x30] sm:$0xff] %v742
        %765 = vst [vmem:[#allocation3 + $0x38] sm:$0xff] %v762
        %v766 = vld [vmem:[#allocation3] sm:$0xff]
        %v767 = vld [vmem:[#allocation3 + $0x8] sm:$0xff]
        %v768 = vld [vmem:[#allocation3 + $0x10] sm:$0xff]
        %v769 = vld [vmem:[#allocation3 + $0x18] sm:$0xff]
        %v770 = vld [vmem:[#allocation3 + $0x20] sm:$0xff]
        %v771 = vld [vmem:[#allocation3 + $0x28] sm:$0xff]
        %v772 = vld [vmem:[#allocation3 + $0x30] sm:$0xff]
        %v773 = vld [vmem:[#allocation3 + $0x38] sm:$0xff]
        %v774 = vmax.f32 %v766, %v770
        %v775 = vmax.f32 %v767, %v771
        %v776 = vmax.f32 %v768, %v772
        %v777 = vmax.f32 %v769, %v773
        %v778 = vmax.f32 %v774, %v775
        %v779 = vmax.f32 %v776, %v777
        %v780 = vmax.f32 %v778, %v779
        %781 = vmax.xlane.f32.xlu0 %v780
        %v782 = vpop.xlane.xlu0 %781
        %v783 = vsub.f32 %v766, %v782
        %v784 = vsub.f32 %v767, %v782
        %v785 = vsub.f32 %v768, %v782
        %v786 = vsub.f32 %v769, %v782
        %v787 = vsub.f32 %v770, %v782
        %v788 = vsub.f32 %v771, %v782
        %v789 = vsub.f32 %v772, %v782
        %v790 = vsub.f32 %v773, %v782
        %v791 = vmul.f32 %v783, 1.442695
        %v792 = vpow.pop %v791
        %v793 = vmul.f32 %v784, 1.442695
        %v794 = vpow.pop %v793
        %v795 = vmul.f32 %v785, 1.442695
        %v796 = vpow.pop %v795
        %v797 = vmul.f32 %v786, 1.442695
        %v798 = vpow.pop %v797
        %v799 = vmul.f32 %v787, 1.442695
        %v800 = vpow.pop %v799
        %v801 = vmul.f32 %v788, 1.442695
        %v802 = vpow.pop %v801
        %v803 = vmul.f32 %v789, 1.442695
        %v804 = vpow.pop %v803
        %v805 = vmul.f32 %v790, 1.442695
        %v806 = vpow.pop %v805
        %v807 = vadd.f32 %v792, %v794
        %v808 = vadd.f32 %v807, %v796
        %v809 = vadd.f32 %v808, %v798
        %v810 = vadd.f32 %v809, %v800
        %v811 = vadd.f32 %v810, %v802
        %v812 = vadd.f32 %v811, %v804
        %v813 = vadd.f32 %v812, %v806
        %814 = vadd.xlane.f32.xlu0 %v813
        %v815 = vpop.xlane.xlu0 %814
        %v816 = vrcp.pop %v815
        %v817 = vmul.f32 %v815, %v816
        %v818 = vsub.f32 1.0, %v817
        %v819 = vmul.f32 %v816, %v818
        %v820 = vadd.f32 %v816, %v819
        %vm821 = vweird.f32 %v815
        %vm822 = vweird.f32 %v816
        %vm823 = vmor %vm821, %vm822
        %v824 = vsel %vm823, %v816, %v820
        %v825 = vand.u32 2147483647, %v815
        %vm826 = vcmp.eq.f32.partialorder %v825, 8.507059e+37
        %v827 = vand.u32 %v815, 2147483648
        %v828 = vor.u32 1.1754944e-38, %v827
        %v829 = vsel %vm826, %v828, %v824
        %v830 = vmul.f32 %v792, %v829
        %v831 = vmul.f32 %v794, %v829
        %v832 = vmul.f32 %v796, %v829
        %v833 = vmul.f32 %v798, %v829
        %v834 = vmul.f32 %v800, %v829
        %v835 = vmul.f32 %v802, %v829
        %v836 = vmul.f32 %v804, %v829
        %v837 = vmul.f32 %v806, %v829
        %838 = vst [vmem:[%s317] sm:$0xff] %v830
        %839 = vst [vmem:[%s317 + $0x8] sm:$0xff] %v831
        %840 = vst [vmem:[%s317 + $0x10] sm:$0xff] %v832
        %841 = vst [vmem:[%s317 + $0x18] sm:$0xff] %v833
        %842 = vst [vmem:[%s317 + $0x20] sm:$0xff] %v834
        %843 = vst [vmem:[%s317 + $0x28] sm:$0xff] %v835
        %844 = vst [vmem:[%s317 + $0x30] sm:$0xff] %v836
        %845 = vst [vmem:[%s317 + $0x38] sm:$0xff] %v837
        %s846 = sand.u32 %s184, 1
        %s847 = scalar_lea.sflag [#allocation6], %s846
        %s848 = sand.u32 %s184, 1
        %s849 = smul.addr %s848, 64
        %s850 = scalar_lea.vmem [#allocation9], %s849
        // Predicated region
        $region57: #{tpu_custom_call.1} parent=43 // pred_check
          %p851 = pneg %p194
        $region58: #{tpu_custom_call.1} parent=43 // pred_check_branch
          %853 = sbr.rel (%p851) target = $region60
        $region59: #{tpu_custom_call.1} parent=43 // pred_region
          %855 = vsyncadd %s847, 0
          %s856 = smul.addr %s29, 8
          %s857 = smul.addr %s28, 8
          %s858 = sadd.s32 %s856, %s857
          %s859 = smul.addr %s858, 8
          %s860 = scalar_lea.hbm %s6, %s859
          %s862 = sshll.u32 %s850, 4
          %s863 = int_to_ptr.vmem [resolvable:$true] %s862
          %s864 = sshll.u32 %s860, 4
          %s865 = int_to_ptr.hbm [resolvable:$true] %s864
          %867 = dma.vmem_to_hbm [thread:$0]  %s863, 1024, %s865, %s847
        $region60: #{tpu_custom_call.1} parent=43 // pred_fallthru
          _
      $region44: #{tpu_custom_call.1} parent=5 // pred_fallthru
        _
      %p868 = scmp.le.s32.totalorder 2, %s19
      // Predicated region
      $region61: #{tpu_custom_call.1} parent=5 // pred_check
        %p869 = pneg %p868
      $region62: #{tpu_custom_call.1} parent=5 // pred_check_branch
        %871 = sbr.rel (%p869) target = $region64
      $region63: #{tpu_custom_call.1} parent=5 // pred_region
        %s872 = ssub.s32 %s19, 2
        // Predicated region
        $region65: #{tpu_custom_call.1} parent=63 // pred_check
          %p873 = pneg %p200
        $region66: #{tpu_custom_call.1} parent=63 // pred_check_branch
          %875 = sbr.rel (%p873) target = $region68
        $region67: #{tpu_custom_call.1} parent=63 // pred_region
          %s876 = sand.u32 %s185, 1
          %s877 = scalar_lea.sflag [#allocation6], %s876
          %s878 = sand.u32 %s185, 1
          %s879 = smul.addr %s878, 64
          %s880 = scalar_lea.vmem [#allocation9], %s879
          %882 = dma.done %s877, 1024
        $region68: #{tpu_custom_call.1} parent=63 // pred_fallthru
          _
      $region64: #{tpu_custom_call.1} parent=5 // pred_fallthru
        _
    $region6: #{tpu_custom_call.1} parent=1 // loop_footer
      %s23 = sadd.s32 1, %s19
    $region7: #{tpu_custom_call.1} parent=1 // loop_footer_branch
      %18 = sbr.rel target = $region3
    $region8: #{tpu_custom_call.1} parent=1 // loop_exit
      _
    %883 = vsyncpa [#allocation5], 1
    %s884 = scalar_lea.sflag [#allocation5], 1
    %885 = vsyncpa %s884, 1
    %886 = vsyncpa [#allocation8], 1
    %887 = vsyncpa [#allocation6], 1
    %s888 = scalar_lea.sflag [#allocation6], 1
    %889 = vsyncpa %s888, 1

</llo_original>
